<compile_context>
chip_gen: v6e
topology: v6e:2x2x1
jax: 0.10.0
libtpu: 0.0.40
codegen_flags: <defaults>
</compile_context>

<pallas_src>
import jax
import jax.numpy as jnp
from jax.experimental import pallas as pl
from jax.experimental.pallas import tpu as pltpu

BN_EPS = 1e-5
H1, H2 = 64, 32


def _round_up(n, m):
    return ((n + m - 1) // m) * m


# ----------------------------------------------------------------------------
# Kernel
# ----------------------------------------------------------------------------
def _mlp_kernel(x_ref, w1_ref, w2_ref, consts_ref, o_ref):
    # consts layout (4, 64) f32:
    #   row 0: b1' (64)   row 1: b2' (32, zero padded)
    #   row 2: w3  (32, zero padded)   row 3: [b3, 0, ...]
    b1 = consts_ref[0:1, :]                       # (1, 64)
    b2 = consts_ref[1:2, 0:H2]                    # (1, 32)
    w3 = consts_ref[2:3, 0:H2]                    # (1, 32)
    b3 = consts_ref[3:4, 0:1]                     # (1, 1)

    # ---- Layer 1: Linear + folded BatchNorm + ReLU (Dropout = identity) ----
    h1 = jnp.dot(x_ref[...], w1_ref[...], preferred_element_type=jnp.float32)
    h1 = jnp.maximum(h1 + b1, 0.0)                # (TB, 64) f32

    # ---- Layer 2: Linear + folded BatchNorm + ReLU --------------------------
    # bf16 MXU inputs (single-pass on v5e), f32 accumulation & elementwise.
    h2 = jnp.dot(h1.astype(jnp.bfloat16), w2_ref[...],
                 preferred_element_type=jnp.float32)
    h2 = jnp.maximum(h2 + b2, 0.0)                # (TB, 32) f32

    # ---- Layer 3: Linear(32, 1) + Sigmoid, emitted lane-dense ---------------
    # VPU multiply, then XLU transpose + sublane reduce -> (1, TB) row so the
    # output store is unmasked and lane-dense (no (TB,1) single-lane stores).
    p = h2 * w3                                   # (TB, 32) f32
    z = jnp.sum(p.T, axis=0, keepdims=True) + b3  # (1, TB) f32
    y = 1.0 / (1.0 + jnp.exp(-z))                 # exact sigmoid; 1/inf == 0
    o_ref[...] = y.reshape(o_ref.shape)


# ----------------------------------------------------------------------------
# Parameter preparation
# ----------------------------------------------------------------------------
def _fold_params(params):
    """Fold BatchNorm (running stats) into the preceding Linear layers."""
    s1 = params["g1"] * jax.lax.rsqrt(params["var1"] + BN_EPS)       # (1, 64)
    w1 = params["w1"] * s1                                           # (F, 64)
    b1 = (params["b1"] - params["mean1"]) * s1 + params["beta1"]     # (1, 64)

    s2 = params["g2"] * jax.lax.rsqrt(params["var2"] + BN_EPS)       # (1, 32)
    w2 = params["w2"] * s2                                           # (64, 32)
    b2 = (params["b2"] - params["mean2"]) * s2 + params["beta2"]     # (1, 32)

    w3_row = params["w3"].T                                          # (1, 32)
    b3 = params["b3"]                                                # (1, 1)
    return w1, b1, w2, b2, w3_row, b3


def _pack_consts(b1, b2, w3_row, b3):
    """Pack b1', b2', w3, b3 into a single (4, 64) f32 VMEM tile."""
    consts = jnp.zeros((4, H1), jnp.float32)
    consts = consts.at[0, :].set(b1[0])
    consts = consts.at[1, :H2].set(b2[0])
    consts = consts.at[2, :H2].set(w3_row[0])
    consts = consts.at[3, 0].set(b3[0, 0])
    return consts


# ----------------------------------------------------------------------------
# Tiling / VMEM budgeting
# ----------------------------------------------------------------------------
def _choose_batch_tile(B, F):
    b8 = _round_up(B, 8)
    # Target a ~2 MiB bf16 x tile, clamp to [256, 2048], 128-aligned so the
    # (1, TB) output block is stored with full unmasked vector stores.
    tb = (2 << 20) // max(2 * F, 1)
    tb = max(256, min(2048, tb))
    tb = _round_up(tb, 128)
    if tb >= b8:
        if b8 >= 256:
            # v7x megacore: keep >= 2 grid steps so both TensorCores get work.
            tb = _round_up((b8 + 1) // 2, 128)
        else:
            tb = b8          # tiny batch: single tile, no extra padding
    return tb


def _vmem_limit_bytes(tb, F, x_buffers):
    """Explicit scoped-VMEM budget: actual buffer footprint + generous slack."""
    lanes_f = _round_up(F, 128)
    x_bytes = x_buffers * tb * lanes_f * 2               # bf16 x tiles
    w1_bytes = _round_up(F, 16) * 128 * 2                # single-buffered W1
    w2_bytes = H1 * 128 * 2                              # single-buffered W2
    consts_bytes = 8 * 128 * 4
    out_bytes = 2 * 8 * _round_up(tb, 128) * 4
    interm_bytes = tb * 256 * 4                          # h1/h2/transpose live values
    budget = (x_bytes + w1_bytes + w2_bytes + consts_bytes
              + out_bytes + interm_bytes + (8 << 20))    # compiler scratch slack
    return int(min(max(budget, 16 << 20), 64 << 20))     # cap at v7x per-TC VMEM


# ----------------------------------------------------------------------------
# Wrapper
# ----------------------------------------------------------------------------
def binary_classifier_forward(x, params, *, batch_tile=None):
    """x: (B, input_size) f32.  params: dict matching init_params()."""
    B, F = x.shape
    w1, b1, w2, b2, w3_row, b3 = _fold_params(params)
    consts = _pack_consts(b1, b2, w3_row, b3)

    # bf16 only for the MXU-facing operands; elementwise math stays f32.
    x_bf = x.astype(jnp.bfloat16)
    w1_bf = w1.astype(jnp.bfloat16)
    w2_bf = w2.astype(jnp.bfloat16)

    tb = batch_tile if batch_tile is not None else _choose_batch_tile(B, F)
    tb = _round_up(tb, 8)
    b_pad = _round_up(B, tb)
    if b_pad != B:
        x_bf = jnp.pad(x_bf, ((0, b_pad - B), (0, 0)))
    num_tiles = b_pad // tb

    x_buffers = 3 if num_tiles >= 3 else 2
    invariant = pl.Buffered(1)   # constant index_map => fetch once, no double buffer

    out = pl.pallas_call(
        _mlp_kernel,
        out_shape=jax.ShapeDtypeStruct((num_tiles, 1, tb), jnp.float32),
        grid=(num_tiles,),
        in_specs=[
            pl.BlockSpec((tb, F), lambda i: (i, 0),
                         pipeline_mode=pl.Buffered(x_buffers)),   # x: streamed
            pl.BlockSpec((F, H1), lambda i: (0, 0),
                         pipeline_mode=invariant),                # W1' (bf16)
            pl.BlockSpec((H1, H2), lambda i: (0, 0),
                         pipeline_mode=invariant),                # W2' (bf16)
            pl.BlockSpec((4, H1), lambda i: (0, 0),
                         pipeline_mode=invariant),                # packed consts
        ],
        out_specs=pl.BlockSpec((1, 1, tb), lambda i: (i, 0, 0)),  # lane-dense row
        compiler_params=pltpu.CompilerParams(
            dimension_semantics=("parallel",),
            vmem_limit_bytes=_vmem_limit_bytes(tb, F, x_buffers)),
    )(x_bf, w1_bf, w2_bf, consts)

    return out.reshape(-1)[:B].reshape(B, 1)


# ----------------------------------------------------------------------------
# Deterministic parameter init matching the PyTorch module's shapes
# ----------------------------------------------------------------------------
def init_params(key, input_size):
    """PyTorch nn.Linear stores weight as (out, in); we store the transpose
    (in, out) so the kernel computes x @ W. BN params / biases are (1, out)."""
    ks = jax.random.split(key, 12)

    def lin(kw, kb, fan_in, fan_out):
        bound = 1.0 / jnp.sqrt(fan_in)
        w = jax.random.uniform(kw, (fan_in, fan_out), jnp.float32, -bound, bound)
        b = jax.random.uniform(kb, (1, fan_out), jnp.float32, -bound, bound)
        return w, b

    w1, b1 = lin(ks[0], ks[1], input_size, H1)
    w2, b2 = lin(ks[2], ks[3], H1, H2)
    w3, b3 = lin(ks[4], ks[5], H2, 1)

    return {
        "w1": w1, "b1": b1,
        "g1": jnp.ones((1, H1), jnp.float32),
        "beta1": jnp.zeros((1, H1), jnp.float32),
        "mean1": 0.1 * jax.random.normal(ks[6], (1, H1), jnp.float32),
        "var1": 1.0 + 0.1 * jax.random.uniform(ks[7], (1, H1), jnp.float32),
        "w2": w2, "b2": b2,
        "g2": jnp.ones((1, H2), jnp.float32),
        "beta2": jnp.zeros((1, H2), jnp.float32),
        "mean2": 0.1 * jax.random.normal(ks[8], (1, H2), jnp.float32),
        "var2": 1.0 + 0.1 * jax.random.uniform(ks[9], (1, H2), jnp.float32),
        "w3": w3, "b3": b3,
    }


# ----------------------------------------------------------------------------
# References
# ----------------------------------------------------------------------------
def _reference_forward(x, p):
    """Plain-JAX f32 reference of the eval-mode PyTorch forward."""
    h1 = x @ p["w1"] + p["b1"]
    h1 = (h1 - p["mean1"]) / jnp.sqrt(p["var1"] + BN_EPS) * p["g1"] + p["beta1"]
    h1 = jnp.maximum(h1, 0.0)
    h2 = h1 @ p["w2"] + p["b2"]
    h2 = (h2 - p["mean2"]) / jnp.sqrt(p["var2"] + BN_EPS) * p["g2"] + p["beta2"]
    h2 = jnp.maximum(h2, 0.0)
    z = h2 @ p["w3"] + p["b3"]
    return jax.nn.sigmoid(z)


def _reference_forward_matched(x, p):
    """Reference sharing the kernel's folded-BN + bf16-matmul numerics."""
    w1, b1, w2, b2, w3_row, b3 = _fold_params(p)
    h1 = jnp.dot(x.astype(jnp.bfloat16), w1.astype(jnp.bfloat16),
                 preferred_element_type=jnp.float32)
    h1 = jnp.maximum(h1 + b1, 0.0)
    h2 = jnp.dot(h1.astype(jnp.bfloat16), w2.astype(jnp.bfloat16),
                 preferred_element_type=jnp.float32)
    h2 = jnp.maximum(h2 + b2, 0.0)
    z = jnp.sum(h2 * w3_row, axis=-1, keepdims=True) + b3
    return 1.0 / (1.0 + jnp.exp(-z))


if __name__ == "__main__":
    key = jax.random.PRNGKey(0)
    k_x, k_p, k_x2 = jax.random.split(key, 3)

    batch, input_size = 8, 32
    x = jax.random.normal(k_x, (batch, input_size), jnp.float32)
    params = init_params(k_p, input_size)

    out = binary_classifier_forward(x, params)
    out = jax.block_until_ready(out)
    assert out.shape == (batch, 1)
    assert bool(jnp.all(jnp.isfinite(out)))

    # Tight check vs a reference sharing the kernel's numerics.
    ref_matched = _reference_forward_matched(x, params)
    assert jnp.allclose(out, ref_matched, atol=2e-3, rtol=2e-3)

    # Semantic check vs the full-f32 PyTorch-equivalent eval-mode forward
    # (tolerance covers the bf16 matmul casts).
    ref_f32 = _reference_forward(x, params)
    assert jnp.allclose(out, ref_f32, atol=2e-2, rtol=2e-2)

    # Second, multi-tile case: exercises grid>1, batch padding, Buffered(3) x.
    batch2 = 40
    x2 = jax.random.normal(k_x2, (batch2, input_size), jnp.float32)
    out2 = jax.block_until_ready(
        binary_classifier_forward(x2, params, batch_tile=16))
    assert out2.shape == (batch2, 1)
    assert jnp.allclose(out2, _reference_forward(x2, params), atol=2e-2, rtol=2e-2)
    assert jnp.allclose(out2, _reference_forward_matched(x2, params),
                        atol=2e-3, rtol=2e-3)

    print("KERNEL_OK")
</pallas_src>

<mosaic_0001>
module attributes {stable_mosaic.version = 11 : i64} {
  func.func @_mlp_kernel(%arg0: i32, %arg1: memref<8x32xbf16, #tpu.memory_space<vmem>>, %arg2: memref<32x64xbf16, #tpu.memory_space<vmem>>, %arg3: memref<64x32xbf16, #tpu.memory_space<vmem>>, %arg4: memref<4x64xf32, #tpu.memory_space<vmem>>, %arg5: memref<1x1x8xf32, #tpu.memory_space<vmem>>) attributes {dimension_semantics = [#tpu.dimension_semantics<parallel>], iteration_bounds = array<i64: 1>, scalar_prefetch = 0 : i64, scratch_operands = 0 : i64, tpu.core_type = #tpu.core_type<tc>, window_params = [{pipeline_mode = #tpu.pipeline_mode<double_buffered>, transform_indices = @transform_0, window_bounds = array<i64: 8, 32>}, {pipeline_mode = #tpu.pipeline_mode<synchronous>, transform_indices = @transform_1, window_bounds = array<i64: 32, 64>}, {pipeline_mode = #tpu.pipeline_mode<synchronous>, transform_indices = @transform_2, window_bounds = array<i64: 64, 32>}, {pipeline_mode = #tpu.pipeline_mode<synchronous>, transform_indices = @transform_3, window_bounds = array<i64: 4, 64>}, {transform_indices = @transform_4, window_bounds = array<i64: 1, 1, 8>}]} {
    %c0 = arith.constant 0 : index
    %c0_0 = arith.constant 0 : index
    %0 = vector.load %arg4[%c0, %c0_0] : memref<4x64xf32, #tpu.memory_space<vmem>>, vector<1x64xf32>
    %c1 = arith.constant 1 : index
    %c0_1 = arith.constant 0 : index
    %1 = vector.load %arg4[%c1, %c0_1] : memref<4x64xf32, #tpu.memory_space<vmem>>, vector<1x32xf32>
    %c2 = arith.constant 2 : index
    %c0_2 = arith.constant 0 : index
    %2 = vector.load %arg4[%c2, %c0_2] : memref<4x64xf32, #tpu.memory_space<vmem>>, vector<1x32xf32>
    %c3 = arith.constant 3 : index
    %c0_3 = arith.constant 0 : index
    %3 = vector.load %arg4[%c3, %c0_3] : memref<4x64xf32, #tpu.memory_space<vmem>>, vector<1x1xf32>
    %c0_4 = arith.constant 0 : index
    %c0_5 = arith.constant 0 : index
    %4 = vector.load %arg1[%c0_4, %c0_5] : memref<8x32xbf16, #tpu.memory_space<vmem>>, vector<8x32xbf16>
    %c0_6 = arith.constant 0 : index
    %c0_7 = arith.constant 0 : index
    %5 = vector.load %arg2[%c0_6, %c0_7] : memref<32x64xbf16, #tpu.memory_space<vmem>>, vector<32x64xbf16>
    %cst = arith.constant dense<0.000000e+00> : vector<8x64xf32>
    %6 = tpu.matmul %4, %5, %cst {dimension_numbers = #tpu.dot_dimension_numbers<[1], [0], [0], [1], [0, 0, 1, 1], [], []>} : vector<8x32xbf16>, vector<32x64xbf16>, vector<8x64xf32> -> vector<8x64xf32>
    %7 = vector.broadcast %0 : vector<1x64xf32> to vector<8x64xf32>
    %8 = arith.addf %6, %7 : vector<8x64xf32>
    %cst_8 = arith.constant 0.000000e+00 : f32
    %9 = vector.broadcast %cst_8 : f32 to vector<8x64xf32>
    %10 = arith.maximumf %8, %9 : vector<8x64xf32>
    %11 = arith.truncf %10 : vector<8x64xf32> to vector<8x64xbf16>
    %c0_9 = arith.constant 0 : index
    %c0_10 = arith.constant 0 : index
    %12 = vector.load %arg3[%c0_9, %c0_10] : memref<64x32xbf16, #tpu.memory_space<vmem>>, vector<64x32xbf16>
    %cst_11 = arith.constant dense<0.000000e+00> : vector<8x32xf32>
    %13 = tpu.matmul %11, %12, %cst_11 {dimension_numbers = #tpu.dot_dimension_numbers<[1], [0], [0], [1], [0, 0, 1, 1], [], []>} : vector<8x64xbf16>, vector<64x32xbf16>, vector<8x32xf32> -> vector<8x32xf32>
    %14 = vector.broadcast %1 : vector<1x32xf32> to vector<8x32xf32>
    %15 = arith.addf %13, %14 : vector<8x32xf32>
    %cst_12 = arith.constant 0.000000e+00 : f32
    %16 = vector.broadcast %cst_12 : f32 to vector<8x32xf32>
    %17 = arith.maximumf %15, %16 : vector<8x32xf32>
    %18 = vector.broadcast %2 : vector<1x32xf32> to vector<8x32xf32>
    %19 = arith.mulf %17, %18 : vector<8x32xf32>
    %20 = tpu.transpose %19, [1, 0] : vector<8x32xf32> -> vector<32x8xf32>
    %cst_13 = arith.constant dense<0.000000e+00> : vector<8xf32>
    %21 = vector.multi_reduction <add>, %20, %cst_13 [0] : vector<32x8xf32> to vector<8xf32>
    %22 = vector.shape_cast %21 : vector<8xf32> to vector<1x8xf32>
    %23 = vector.broadcast %3 : vector<1x1xf32> to vector<1x8xf32>
    %24 = arith.addf %22, %23 : vector<1x8xf32>
    %cst_14 = arith.constant 0.000000e+00 : f32
    %25 = vector.broadcast %cst_14 : f32 to vector<1x8xf32>
    %26 = arith.subf %25, %24 : vector<1x8xf32>
    %27 = math.exp %26 : vector<1x8xf32>
    %cst_15 = arith.constant 1.000000e+00 : f32
    %28 = vector.broadcast %cst_15 : f32 to vector<1x8xf32>
    %29 = arith.addf %28, %27 : vector<1x8xf32>
    %cst_16 = arith.constant 1.000000e+00 : f32
    %30 = vector.broadcast %cst_16 : f32 to vector<1x8xf32>
    %31 = arith.divf %30, %29 : vector<1x8xf32>
    %32 = vector.shape_cast %31 : vector<1x8xf32> to vector<1x1x8xf32>
    %c0_17 = arith.constant 0 : index
    %c0_18 = arith.constant 0 : index
    %c0_19 = arith.constant 0 : index
    %33 = vector.load %arg5[%c0_17, %c0_18, %c0_19] : memref<1x1x8xf32, #tpu.memory_space<vmem>>, vector<1x1x8xf32>
    tpu.vector_store %arg5[%c0_17, %c0_18, %c0_19], %32 {strides = array<i32>} : memref<1x1x8xf32, #tpu.memory_space<vmem>>, vector<1x1x8xf32>,
    return
  }
  func.func @transform_0(%arg0: i32) -> (i32, i32) {
    %c0_i32 = arith.constant 0 : i32
    %c0_i32_0 = arith.constant 0 : i32
    return %arg0, %c0_i32 : i32, i32
  }
  func.func @transform_1(%arg0: i32) -> (i32, i32) {
    %c0_i32 = arith.constant 0 : i32
    %c0_i32_0 = arith.constant 0 : i32
    %c0_i32_1 = arith.constant 0 : i32
    return %c0_i32, %c0_i32_0 : i32, i32
  }
  func.func @transform_2(%arg0: i32) -> (i32, i32) {
    %c0_i32 = arith.constant 0 : i32
    %c0_i32_0 = arith.constant 0 : i32
    %c0_i32_1 = arith.constant 0 : i32
    return %c0_i32, %c0_i32_0 : i32, i32
  }
  func.func @transform_3(%arg0: i32) -> (i32, i32) {
    %c0_i32 = arith.constant 0 : i32
    %c0_i32_0 = arith.constant 0 : i32
    %c0_i32_1 = arith.constant 0 : i32
    return %c0_i32, %c0_i32_0 : i32, i32
  }
  func.func @transform_4(%arg0: i32) -> (i32, i32, i32) {
    %c0_i32 = arith.constant 0 : i32
    %c0_i32_0 = arith.constant 0 : i32
    %c0_i32_1 = arith.constant 0 : i32
    return %arg0, %c0_i32, %c0_i32_0 : i32, i32, i32
  }
}

</mosaic_0001>

<llo_original>
// kernel: tpu_custom_call.1
$region0: #{tpu_custom_call.1}
  #allocation0 [shape = 'u32[]', space=smem, size = 0x4, offset = 0x4, fixed_abs, tag = 'smem constant byte address 0x4 - core index']
  #allocation1 [shape = 'u32[144,128]{1,0:T(1,128)}', space=vmem, size = 0x12000, scoped, tag = 'internal scratch']
  %s0 = inlined_call_operand.vmem [shape: bf16[8,32], index: 0, kind: input, shape index: {}]
  %s1 = inlined_call_operand.vmem [shape: bf16[32,64], index: 1, kind: input, shape index: {}]
  %s2 = inlined_call_operand.vmem [shape: bf16[64,32], index: 2, kind: input, shape index: {}]
  %s3 = inlined_call_operand.vmem [shape: f32[4,64], index: 3, kind: input, shape index: {}]
  %s4 = inlined_call_operand.hbm [shape: f32[1,1,8], index: 4, kind: output, shape index: {}]
  %s5 = sld [smem:[#allocation0]]
  $region26: #{tpu_custom_call.1} parent=0
    _
  %s7 = ssub.s32 1, %s5
  %s8 = scalar_select 0, %s7, %s5
  $region1: #{tpu_custom_call.1} parent=0
    #allocation2 [shape = 'u8[512]{0}', space=vmem, size = 0x400, scoped, tag = 'output window, operand 0, single buffered']
    #allocation3 [shape = 's32[1]{0}', space=sflag, size = 0x4, scoped, tag = 'scoped memory for tpu_custom_call.1']
    %9 = vsyncpa [#allocation3], 0
    // Predicated region
    $region2: #{tpu_custom_call.1} parent=1 // pred_check
      _
    $region3: #{tpu_custom_call.1} parent=1 // pred_check_branch
      %11 = sbr.rel (0) target = $region5
    $region4: #{tpu_custom_call.1} parent=1 // pred_region
      _
    $region5: #{tpu_custom_call.1} parent=1 // pred_fallthru
      _
    // Predicated region
    $region6: #{tpu_custom_call.1} parent=1 // pred_check
      _
    $region7: #{tpu_custom_call.1} parent=1 // pred_check_branch
      %13 = sbr.rel (0) target = $region9
    $region8: #{tpu_custom_call.1} parent=1 // pred_region
      _
    $region9: #{tpu_custom_call.1} parent=1 // pred_fallthru
      _
    // Predicated region
    $region10: #{tpu_custom_call.1} parent=1 // pred_check
      _
    $region11: #{tpu_custom_call.1} parent=1 // pred_check_branch
      %15 = sbr.rel (0) target = $region13
    $region12: #{tpu_custom_call.1} parent=1 // pred_region
      _
    $region13: #{tpu_custom_call.1} parent=1 // pred_fallthru
      _
    // Predicated region
    $region14: #{tpu_custom_call.1} parent=1 // pred_check
      _
    $region15: #{tpu_custom_call.1} parent=1 // pred_check_branch
      %17 = sbr.rel (0) target = $region17
    $region16: #{tpu_custom_call.1} parent=1 // pred_region
      _
    $region17: #{tpu_custom_call.1} parent=1 // pred_fallthru
      _
    %v19 = vld [vmem:[%s3] sm:$0x1]
    %v20 = vld [vmem:[%s3 + $0x1] sm:$0x1]
    %v21 = vld [vmem:[%s3 + $0x2] sm:$0x1]
    %v22 = vld [vmem:[%s3 + $0x3] sm:$0x1]
    %v23 = vld [vmem:[%s0] sm:$0xf]
    %v24 = vld [vmem:[%s1] sm:$0xf]
    %v25 = vld [vmem:[%s1 + $0x4] sm:$0xf]
    %v26 = vld [vmem:[%s1 + $0x8] sm:$0xf]
    %v27 = vld [vmem:[%s1 + $0xc] sm:$0xf]
    %v28 = vlaneseq
    %v29 = vshrl.u32 %v28, 7
    %v30 = vsub.s32 0, %v29
    %v31 = vrot.slane %v19, %v30
    %v36 = vunpack.c.l.b16 %v24
    %v37 = vunpack.c.l.b16 %v25
    %v38 = vunpack.c.l.b16 %v26
    %v39 = vunpack.c.l.b16 %v27
    %v40 = vpack.c.b16 %v37, %v36
    %v41 = vpack.c.b16 %v39, %v38
    %vm44 = vcmask 261120
    %v46 = vsel %vm44, %v23, 0
    %48 = vmatprep.subr.bf16.mxu0 0
    %49 = vmatpush1.bf16.msra.mxu0 0
    %50 = vmatprep.subr.bf16.mxu0 0
    %51 = vmatpush1.bf16.msra.mxu0 0
    %52 = vmatprep.subr.bf16.mxu0 0
    %53 = vmatpush1.bf16.msra.mxu0 0
    %54 = vmatprep.subr.bf16.mxu0 0
    %55 = vmatpush1.bf16.msra.mxu0 0
    %56 = vmatprep.subr.bf16.mxu0 0
    %57 = vmatpush1.bf16.msra.mxu0 0
    %58 = vmatprep.subr.bf16.mxu0 0
    %59 = vmatpush1.bf16.msra.mxu0 0
    %60 = vmatprep.subr.bf16.mxu0 0
    %61 = vmatpush1.bf16.msra.mxu0 %v41
    %62 = vmatprep.subr.bf16.mxu0 0
    %63 = vmatpush1.bf16.msra.mxu0 %v40
    %64 = vmatprep.subr.bf16.mxu0 0
    %65 = vmatpush2.bf16.msra.mxu0 0
    %66 = vmatprep.subr.bf16.mxu0 0
    %67 = vmatpush2.bf16.msra.mxu0 0
    %68 = vmatprep.subr.bf16.mxu0 0
    %69 = vmatpush2.bf16.msra.mxu0 0
    %70 = vmatprep.subr.bf16.mxu0 0
    %71 = vmatpush2.bf16.msra.mxu0 0
    %72 = vmatprep.subr.bf16.mxu0 0
    %73 = vmatpush2.bf16.msra.mxu0 0
    %74 = vmatprep.subr.bf16.mxu0 0
    %75 = vmatpush2.bf16.msra.mxu0 0
    %76 = vmatprep.subr.bf16.mxu0 0
    %77 = vmatpush2.bf16.msra.mxu0 0
    %78 = vmatprep.subr.bf16.mxu0 0
    %79 = vmatpush2.bf16.msra.mxu0 0
    %80 = vmatprep.mubr.bf16.mxu0 0
    %81 = vmatmul.mubr.bf16.gmra.mxu0 %v46
    %v82 = vpop.f32.mrf.mxu0
    %v83 = vadd.f32 %v31, %v82
    %v84 = vpop.f32.mrf.mxu0
    %v85 = vpop.f32.mrf.mxu0
    %v86 = vpop.f32.mrf.mxu0
    %87 = vdwg.mxu0
    %v88 = vmax.f32 %v83, 0.0
    %v89 = vpack.c.bf16 %v88, %v88
    %v90 = vld [vmem:[%s2] sm:$0xf]
    %v91 = vld [vmem:[%s2 + $0x4] sm:$0xf]
    %v92 = vld [vmem:[%s2 + $0x8] sm:$0xf]
    %v93 = vld [vmem:[%s2 + $0xc] sm:$0xf]
    %v94 = vld [vmem:[%s2 + $0x10] sm:$0xf]
    %v95 = vld [vmem:[%s2 + $0x14] sm:$0xf]
    %v96 = vld [vmem:[%s2 + $0x18] sm:$0xf]
    %v97 = vld [vmem:[%s2 + $0x1c] sm:$0xf]
    %v98 = vlaneseq
    %v99 = vshrl.u32 %v98, 7
    %v100 = vsub.s32 0, %v99
    %v101 = vrot.slane %v20, %v100
    %v110 = vunpack.c.l.b16 %v90
    %v111 = vunpack.c.l.b16 %v91
    %v112 = vunpack.c.l.b16 %v92
    %v113 = vunpack.c.l.b16 %v93
    %v114 = vunpack.c.l.b16 %v94
    %v115 = vunpack.c.l.b16 %v95
    %v116 = vunpack.c.l.b16 %v96
    %v117 = vunpack.c.l.b16 %v97
    %v118 = vpack.c.b16 %v111, %v110
    %v119 = vpack.c.b16 %v113, %v112
    %v120 = vpack.c.b16 %v115, %v114
    %v121 = vpack.c.b16 %v117, %v116
    %vm126 = vcmask 523264
    %v128 = vsel %vm126, %v89, 0
    %130 = vmatprep.subr.bf16.mxu0 0
    %131 = vmatpush1.bf16.msra.mxu0 0
    %132 = vmatprep.subr.bf16.mxu0 0
    %133 = vmatpush1.bf16.msra.mxu0 0
    %134 = vmatprep.subr.bf16.mxu0 0
    %135 = vmatpush1.bf16.msra.mxu0 0
    %136 = vmatprep.subr.bf16.mxu0 0
    %137 = vmatpush1.bf16.msra.mxu0 0
    %138 = vmatprep.subr.bf16.mxu0 0
    %139 = vmatpush1.bf16.msra.mxu0 %v121
    %140 = vmatprep.subr.bf16.mxu0 0
    %141 = vmatpush1.bf16.msra.mxu0 %v120
    %142 = vmatprep.subr.bf16.mxu0 0
    %143 = vmatpush1.bf16.msra.mxu0 %v119
    %144 = vmatprep.subr.bf16.mxu0 0
    %145 = vmatpush1.bf16.msra.mxu0 %v118
    %146 = vmatprep.subr.bf16.mxu0 0
    %147 = vmatpush2.bf16.msra.mxu0 0
    %148 = vmatprep.subr.bf16.mxu0 0
    %149 = vmatpush2.bf16.msra.mxu0 0
    %150 = vmatprep.subr.bf16.mxu0 0
    %151 = vmatpush2.bf16.msra.mxu0 0
    %152 = vmatprep.subr.bf16.mxu0 0
    %153 = vmatpush2.bf16.msra.mxu0 0
    %154 = vmatprep.subr.bf16.mxu0 0
    %155 = vmatpush2.bf16.msra.mxu0 0
    %156 = vmatprep.subr.bf16.mxu0 0
    %157 = vmatpush2.bf16.msra.mxu0 0
    %158 = vmatprep.subr.bf16.mxu0 0
    %159 = vmatpush2.bf16.msra.mxu0 0
    %160 = vmatprep.subr.bf16.mxu0 0
    %161 = vmatpush2.bf16.msra.mxu0 0
    %162 = vmatprep.mubr.bf16.mxu0 0
    %163 = vmatmul.mubr.bf16.gmra.mxu0 %v128
    %v164 = vpop.f32.mrf.mxu0
    %v165 = vadd.f32 %v101, %v164
    %v166 = vpop.f32.mrf.mxu0
    %v167 = vpop.f32.mrf.mxu0
    %v168 = vpop.f32.mrf.mxu0
    %169 = vdwg.mxu0
    %v170 = vmax.f32 %v165, 0.0
    %v171 = vlaneseq
    %v172 = vshrl.u32 %v171, 7
    %v173 = vsub.s32 0, %v172
    %v174 = vrot.slane %v21, %v173
    %v175 = vmul.f32 %v170, %v174
    %176 = vxpose.xlu0.b32.start [1/16] %v175, 128
    %177 = vxpose.xlu0.b32.cont [2/16] 0.0, 128
    %178 = vxpose.xlu0.b32.cont [3/16] 0.0, 128
    %179 = vxpose.xlu0.b32.cont [4/16] 0.0, 128
    %180 = vxpose.xlu0.b32.cont [5/16] 0.0, 128
    %181 = vxpose.xlu0.b32.cont [6/16] 0.0, 128
    %182 = vxpose.xlu0.b32.cont [7/16] 0.0, 128
    %183 = vxpose.xlu0.b32.cont [8/16] 0.0, 128
    %184 = vxpose.xlu0.b32.cont [9/16] 0.0, 128
    %185 = vxpose.xlu0.b32.cont [10/16] 0.0, 128
    %186 = vxpose.xlu0.b32.cont [11/16] 0.0, 128
    %187 = vxpose.xlu0.b32.cont [12/16] 0.0, 128
    %188 = vxpose.xlu0.b32.cont [13/16] 0.0, 128
    %189 = vxpose.xlu0.b32.cont [14/16] 0.0, 128
    %190 = vxpose.xlu0.b32.cont [15/16] 0.0, 128
    %191 = vxpose.xlu0.b32.end [16/16] 0.0, 128
    %v192 = vpop.trf.xlu0
    %v193 = vpop.trf.xlu0
    %v194 = vpop.trf.xlu0
    %v195 = vpop.trf.xlu0
    %v196 = vpop.trf.xlu0
    %v197 = vpop.trf.xlu0
    %v198 = vpop.trf.xlu0
    %v199 = vpop.trf.xlu0
    %v200 = vpop.trf.xlu0
    %v201 = vpop.trf.xlu0
    %v202 = vpop.trf.xlu0
    %v203 = vpop.trf.xlu0
    %v204 = vpop.trf.xlu0
    %v205 = vpop.trf.xlu0
    %v206 = vpop.trf.xlu0
    %v207 = vpop.trf.xlu0
    %vm208 = vcmask 64512
    %v209 = vsel %vm208, %v192, 0.0
    %v210 = vsel %vm208, %v193, 0.0
    %v211 = vadd.f32 %v209, %v210
    %v212 = vsel %vm208, %v194, 0.0
    %v213 = vadd.f32 %v211, %v212
    %v214 = vsel %vm208, %v195, 0.0
    %v215 = vadd.f32 %v213, %v214
    %v216 = vrot.slane %v215, 4
    %v217 = vadd.f32 %v215, %v216
    %v218 = vrot.slane %v217, 2
    %v219 = vadd.f32 %v217, %v218
    %v220 = vrot.slane %v219, 1
    %v221 = vadd.f32 %v219, %v220
    %223 = vset.pattern.permute.xlu0 0
    %224 = vperm.xlu0 %223, %v22
    %v225 = vpop.permute.xlu0 %224
    %v227 = vadd.f32 %v221, %v225
    %v228 = vsub.f32 0.0, %v227
    %v229 = vmul.f32 %v228, 1.442695
    %v230 = vpow.pop %v229
    %v231 = vadd.f32 %v230, 1.0
    %v232 = vrcp.pop %v231
    %v233 = vmul.f32 1.0, %v232
    %vm234 = vcmask 57344
    %235 = vst.msk [vmem:[#allocation2] sm:$0x1] %vm234, %v233
    // Predicated region
    $region18: #{tpu_custom_call.1} parent=1 // pred_check
      _
    $region19: #{tpu_custom_call.1} parent=1 // pred_check_branch
      %237 = sbr.rel (0) target = $region21
    $region20: #{tpu_custom_call.1} parent=1 // pred_region
      %s239 = ssub.s32 16, 16
      %240 = vsyncadd [#allocation3], %s239
      %s242 = sshll.u32 [#allocation2], 4
      %s243 = int_to_ptr.vmem [resolvable:$true] %s242
      %245 = dma.vmem_to_hbm [thread:$0]  %s243, 16, %s4, [#allocation3]
    $region21: #{tpu_custom_call.1} parent=1 // pred_fallthru
      _
    // Predicated region
    $region22: #{tpu_custom_call.1} parent=1 // pred_check
      _
    $region23: #{tpu_custom_call.1} parent=1 // pred_check_branch
      %247 = sbr.rel (0) target = $region25
    $region24: #{tpu_custom_call.1} parent=1 // pred_region
      %248 = dma.done [#allocation3], 16
    $region25: #{tpu_custom_call.1} parent=1 // pred_fallthru
      _
    %249 = vsyncpa [#allocation3], 1

</llo_original>
